<compile_context>
chip_gen: v5e
topology: v5e:2x2
jax: 0.10.0
libtpu: 0.0.40
codegen_flags: <defaults>
</compile_context>

<pallas_src>
import jax
import jax.numpy as jnp
from jax.experimental import pallas as pl
from jax.experimental.pallas import tpu as pltpu


def _round_up(n, m):
    return ((n + m - 1) // m) * m


def _cdiv(a, b):
    return (a + b - 1) // b


def _device_defaults():
    """(min_blocks, bf16_epilogue) from the attached TPU generation."""
    try:
        kind = jax.devices()[0].device_kind.lower()
    except Exception:
        kind = ""
    is_v7 = ("v7" in kind) or ("7x" in kind)
    is_v6 = "v6" in kind
    min_blocks = 2 if is_v7 else 1          # v7x: 2 TCs -> need >=2 grid steps
    bf16_epilogue = is_v6 or is_v7          # v5e and older: no bf16 VPU
    return min_blocks, bf16_epilogue


def _choose_tiling(B, tb_max, min_blocks):
    """Batch tile (multiple of 8) and block count (multiple of min_blocks)."""
    if B < 8 * min_blocks:
        min_blocks = 1
    nb = max(min_blocks, _cdiv(B, tb_max))
    nb = min_blocks * _cdiv(nb, min_blocks)
    tb = _round_up(_cdiv(B, nb), 8)
    nb = _cdiv(B, tb)
    nb = min_blocks * _cdiv(nb, min_blocks)
    return tb, nb


def mlp_kernel(xg_ref, w1_ref, b1_ref, w2_ref, b2_ref, w3_ref, b3_ref,
               w4r_ref, b4_ref, o_ref):
    ep = b1_ref.dtype            # epilogue compute dtype (f32 on v5e, bf16 on v6e/v7x)
    mxu = w1_ref.dtype           # bf16 MXU operand dtype

    # fc1 (goal column already folded into xg / W1), bias + ReLU.
    h = jnp.dot(xg_ref[...], w1_ref[...], preferred_element_type=jnp.float32)
    h = jnp.maximum(h.astype(ep) + b1_ref[...], 0).astype(mxu)

    # fc2 + ReLU
    h = jnp.dot(h, w2_ref[...], preferred_element_type=jnp.float32)
    h = jnp.maximum(h.astype(ep) + b2_ref[...], 0).astype(mxu)

    # fc3 + ReLU
    h = jnp.dot(h, w3_ref[...], preferred_element_type=jnp.float32)
    h = jnp.maximum(h.astype(ep) + b3_ref[...], 0)

    # fc4: single real output column -> VPU multiply + XLU lane reduce (f32),
    # stored as a narrow (tb, 1) tile (no 128-wide padded writeback).
    o_ref[...] = (jnp.sum(h * w4r_ref[...], axis=-1, keepdims=True)
                  + b4_ref[...])


def init_params(key, in_dim=5, FC1_dim=200, FC2_dim=200, FC3_dim=40, out_dim=1):
    """nn.Linear-style init: U(-1/sqrt(fan_in), 1/sqrt(fan_in)).
    Weights are (in_features, out_features); biases are (1, out_features)."""
    dims = [in_dim * in_dim + 1, FC1_dim, FC2_dim, FC3_dim, out_dim]
    params = []
    for i in range(4):
        key, kw, kb = jax.random.split(key, 3)
        fan_in, fan_out = dims[i], dims[i + 1]
        bound = 1.0 / jnp.sqrt(jnp.float32(fan_in))
        w = jax.random.uniform(kw, (fan_in, fan_out), jnp.float32,
                               minval=-bound, maxval=bound)
        b = jax.random.uniform(kb, (1, fan_out), jnp.float32,
                               minval=-bound, maxval=bound)
        params.append((w, b))
    return params


def prepare_params(params, mxu_dtype=jnp.bfloat16, epilogue_dtype=None):
    """One-time prep: zero-pad feature dims to multiples of 128, pad fc1
    fan-in (25 image + 1 goal) up to 32, store MXU weights in bf16, biases in
    the epilogue dtype, and keep fc4 as a single f32 row (1, d3)."""
    if epilogue_dtype is None:
        epilogue_dtype = (jnp.bfloat16 if _device_defaults()[1]
                          else jnp.float32)
    (w1, b1), (w2, b2), (w3, b3), (w4, b4) = params
    assert w4.shape[1] == 1, "kernel assumes out_dim == 1 (module default)"

    def padded(a, rows, cols, dtype):
        out = jnp.zeros((rows, cols), dtype)
        return out.at[:a.shape[0], :a.shape[1]].set(a.astype(dtype))

    in_pad = _round_up(w1.shape[0], 8)       # 26 -> 32 (image + goal + zeros)
    d1 = _round_up(w1.shape[1], 128)         # 200 -> 256
    d2 = _round_up(w2.shape[1], 128)         # 200 -> 256
    d3 = _round_up(w3.shape[1], 128)         # 40  -> 128

    w1p = padded(w1, in_pad, d1, mxu_dtype)
    b1p = padded(b1, 1, d1, epilogue_dtype)
    w2p = padded(w2, d1, d2, mxu_dtype)
    b2p = padded(b2, 1, d2, epilogue_dtype)
    w3p = padded(w3, d2, d3, mxu_dtype)
    b3p = padded(b3, 1, d3, epilogue_dtype)
    w4r = padded(w4.T, 1, d3, jnp.float32)   # (1, d3) row for the lane reduce
    b4p = jnp.asarray(b4, jnp.float32).reshape(1, 1)
    return (w1p, b1p, w2p, b2p, w3p, b3p, w4r, b4p)


def net_mlp_forward(x, g, prepared, *, tb_max=2048, min_blocks=None):
    """x: (B, 1, in_dim, in_dim) float32 NCHW; g: (B, 1) float32.
    Returns (B, 1) float32."""
    (w1, b1, w2, b2, w3, b3, w4r, b4) = prepared
    in_pad, d1 = w1.shape
    d2 = w2.shape[1]
    d3 = w3.shape[1]
    mxu_dtype = w1.dtype

    B = x.shape[0]
    in_feat = 1
    for s in x.shape[1:]:
        in_feat *= s                         # 1 * in_dim * in_dim
    assert in_feat + 1 <= in_pad
    x_flat = x.reshape(B, in_feat)
    g = g.reshape(B, 1)

    if min_blocks is None:
        min_blocks = _device_defaults()[0]
    tb, nb = _choose_tiling(B, tb_max, min_blocks)
    B_pad = tb * nb

    # Fused concat([x_flat, g]) + zero-pad (batch and fan-in) + bf16 cast on
    # the wrapper side: one cheap XLA op, halves the x HBM read and removes
    # the separate g stream / in-kernel cast.  Padded rows/cols are zero.
    xg = jnp.zeros((B_pad, in_pad), mxu_dtype)
    xg = xg.at[:B, :in_feat].set(x_flat.astype(mxu_dtype))
    xg = xg.at[:B, in_feat:in_feat + 1].set(g.astype(mxu_dtype))

    batch_map = lambda i: (i, 0)             # activation tiles march over batch
    fixed_map = lambda i: (0, 0)             # weights/biases stay VMEM-resident

    flops = 2 * B_pad * (in_pad * d1 + d1 * d2 + d2 * d3 + d3 * 1)
    weight_bytes = sum(int(t.size) * t.dtype.itemsize for t in prepared)
    bytes_accessed = (int(xg.size) * xg.dtype.itemsize   # bf16 input
                      + B_pad * 4                        # narrow f32 output
                      + weight_bytes)

    out = pl.pallas_call(
        mlp_kernel,
        out_shape=jax.ShapeDtypeStruct((B_pad, 1), jnp.float32),
        grid=(nb,),
        in_specs=[
            pl.BlockSpec((tb, in_pad), batch_map),   # xg
            pl.BlockSpec(w1.shape, fixed_map),
            pl.BlockSpec(b1.shape, fixed_map),
            pl.BlockSpec(w2.shape, fixed_map),
            pl.BlockSpec(b2.shape, fixed_map),
            pl.BlockSpec(w3.shape, fixed_map),
            pl.BlockSpec(b3.shape, fixed_map),
            pl.BlockSpec(w4r.shape, fixed_map),
            pl.BlockSpec(b4.shape, fixed_map),
        ],
        out_specs=pl.BlockSpec((tb, 1), batch_map),
        compiler_params=pltpu.CompilerParams(
            dimension_semantics=("parallel",)),
        cost_estimate=pl.CostEstimate(flops=flops, transcendentals=0,
                                      bytes_accessed=bytes_accessed),
    )(xg, w1, b1, w2, b2, w3, b3, w4r, b4)

    if B_pad == B:
        return out
    return out[:B]                            # drop zero-padded batch rows


if __name__ == "__main__":
    key = jax.random.PRNGKey(0)
    k_x, k_g, k_p = jax.random.split(key, 3)

    B, in_dim = 2, 5
    x = jax.random.normal(k_x, (B, 1, in_dim, in_dim), jnp.float32)   # NCHW
    g = jax.random.normal(k_g, (B, 1), jnp.float32)

    params = init_params(k_p, in_dim=in_dim)
    prepared = prepare_params(params)          # one-time: pad / bf16 / fold g

    fwd = jax.jit(lambda xx, gg: net_mlp_forward(xx, gg, prepared))
    out = jax.block_until_ready(fwd(x, g))

    # Pure-JAX f32 reference (original module math).
    (w1, b1), (w2, b2), (w3, b3), (w4, b4) = params
    h = jnp.concatenate([x.reshape(B, -1), g], axis=1)
    h = jnp.maximum(h @ w1 + b1, 0.0)
    h = jnp.maximum(h @ w2 + b2, 0.0)
    h = jnp.maximum(h @ w3 + b3, 0.0)
    ref = h @ w4 + b4

    assert out.shape == (B, 1)
    # bf16 weights (+ bf16 epilogue on v6e/v7x) vs f32 reference -> loose tol.
    assert jnp.allclose(out, ref, atol=3e-2, rtol=3e-2), \
        float(jnp.max(jnp.abs(out - ref)))

    print("KERNEL_OK")
</pallas_src>

<mosaic_0001>
module attributes {stable_mosaic.version = 11 : i64} {
  func.func @mlp_kernel(%arg0: i32, %arg1: memref<8x32xbf16, #tpu.memory_space<vmem>>, %arg2: memref<32x256xbf16, #tpu.memory_space<vmem>>, %arg3: memref<1x256xf32, #tpu.memory_space<vmem>>, %arg4: memref<256x256xbf16, #tpu.memory_space<vmem>>, %arg5: memref<1x256xf32, #tpu.memory_space<vmem>>, %arg6: memref<256x128xbf16, #tpu.memory_space<vmem>>, %arg7: memref<1x128xf32, #tpu.memory_space<vmem>>, %arg8: memref<1x128xf32, #tpu.memory_space<vmem>>, %arg9: memref<1x1xf32, #tpu.memory_space<vmem>>, %arg10: memref<8x1xf32, #tpu.memory_space<vmem>>) attributes {dimension_semantics = [#tpu.dimension_semantics<parallel>], iteration_bounds = array<i64: 1>, scalar_prefetch = 0 : i64, scratch_operands = 0 : i64, tpu.core_type = #tpu.core_type<tc>, window_params = [{transform_indices = @transform_0, window_bounds = array<i64: 8, 32>}, {pipeline_mode = #tpu.pipeline_mode<synchronous>, transform_indices = @transform_1, window_bounds = array<i64: 32, 256>}, {pipeline_mode = #tpu.pipeline_mode<synchronous>, transform_indices = @transform_2, window_bounds = array<i64: 1, 256>}, {pipeline_mode = #tpu.pipeline_mode<synchronous>, transform_indices = @transform_3, window_bounds = array<i64: 256, 256>}, {pipeline_mode = #tpu.pipeline_mode<synchronous>, transform_indices = @transform_4, window_bounds = array<i64: 1, 256>}, {pipeline_mode = #tpu.pipeline_mode<synchronous>, transform_indices = @transform_5, window_bounds = array<i64: 256, 128>}, {pipeline_mode = #tpu.pipeline_mode<synchronous>, transform_indices = @transform_6, window_bounds = array<i64: 1, 128>}, {pipeline_mode = #tpu.pipeline_mode<synchronous>, transform_indices = @transform_7, window_bounds = array<i64: 1, 128>}, {pipeline_mode = #tpu.pipeline_mode<synchronous>, transform_indices = @transform_8, window_bounds = array<i64: 1, 1>}, {transform_indices = @transform_9, window_bounds = array<i64: 8, 1>}]} {
    %c0 = arith.constant 0 : index
    %c0_0 = arith.constant 0 : index
    %0 = vector.load %arg1[%c0, %c0_0] : memref<8x32xbf16, #tpu.memory_space<vmem>>, vector<8x32xbf16>
    %c0_1 = arith.constant 0 : index
    %c0_2 = arith.constant 0 : index
    %1 = vector.load %arg2[%c0_1, %c0_2] : memref<32x256xbf16, #tpu.memory_space<vmem>>, vector<32x256xbf16>
    %cst = arith.constant dense<0.000000e+00> : vector<8x256xf32>
    %2 = tpu.matmul %0, %1, %cst {dimension_numbers = #tpu.dot_dimension_numbers<[1], [0], [0], [1], [0, 0, 1, 1], [], []>} : vector<8x32xbf16>, vector<32x256xbf16>, vector<8x256xf32> -> vector<8x256xf32>
    %c0_3 = arith.constant 0 : index
    %c0_4 = arith.constant 0 : index
    %3 = vector.load %arg3[%c0_3, %c0_4] : memref<1x256xf32, #tpu.memory_space<vmem>>, vector<1x256xf32>
    %4 = vector.broadcast %3 : vector<1x256xf32> to vector<8x256xf32>
    %5 = arith.addf %2, %4 : vector<8x256xf32>
    %cst_5 = arith.constant 0.000000e+00 : f32
    %6 = vector.broadcast %cst_5 : f32 to vector<8x256xf32>
    %7 = arith.maximumf %5, %6 : vector<8x256xf32>
    %8 = arith.truncf %7 : vector<8x256xf32> to vector<8x256xbf16>
    %c0_6 = arith.constant 0 : index
    %c0_7 = arith.constant 0 : index
    %9 = vector.load %arg4[%c0_6, %c0_7] : memref<256x256xbf16, #tpu.memory_space<vmem>>, vector<256x256xbf16>
    %cst_8 = arith.constant dense<0.000000e+00> : vector<8x256xf32>
    %10 = tpu.matmul %8, %9, %cst_8 {dimension_numbers = #tpu.dot_dimension_numbers<[1], [0], [0], [1], [0, 0, 1, 1], [], []>} : vector<8x256xbf16>, vector<256x256xbf16>, vector<8x256xf32> -> vector<8x256xf32>
    %c0_9 = arith.constant 0 : index
    %c0_10 = arith.constant 0 : index
    %11 = vector.load %arg5[%c0_9, %c0_10] : memref<1x256xf32, #tpu.memory_space<vmem>>, vector<1x256xf32>
    %12 = vector.broadcast %11 : vector<1x256xf32> to vector<8x256xf32>
    %13 = arith.addf %10, %12 : vector<8x256xf32>
    %cst_11 = arith.constant 0.000000e+00 : f32
    %14 = vector.broadcast %cst_11 : f32 to vector<8x256xf32>
    %15 = arith.maximumf %13, %14 : vector<8x256xf32>
    %16 = arith.truncf %15 : vector<8x256xf32> to vector<8x256xbf16>
    %c0_12 = arith.constant 0 : index
    %c0_13 = arith.constant 0 : index
    %17 = vector.load %arg6[%c0_12, %c0_13] : memref<256x128xbf16, #tpu.memory_space<vmem>>, vector<256x128xbf16>
    %cst_14 = arith.constant dense<0.000000e+00> : vector<8x128xf32>
    %18 = tpu.matmul %16, %17, %cst_14 {dimension_numbers = #tpu.dot_dimension_numbers<[1], [0], [0], [1], [0, 0, 1, 1], [], []>} : vector<8x256xbf16>, vector<256x128xbf16>, vector<8x128xf32> -> vector<8x128xf32>
    %c0_15 = arith.constant 0 : index
    %c0_16 = arith.constant 0 : index
    %19 = vector.load %arg7[%c0_15, %c0_16] : memref<1x128xf32, #tpu.memory_space<vmem>>, vector<1x128xf32>
    %20 = vector.broadcast %19 : vector<1x128xf32> to vector<8x128xf32>
    %21 = arith.addf %18, %20 : vector<8x128xf32>
    %cst_17 = arith.constant 0.000000e+00 : f32
    %22 = vector.broadcast %cst_17 : f32 to vector<8x128xf32>
    %23 = arith.maximumf %21, %22 : vector<8x128xf32>
    %c0_18 = arith.constant 0 : index
    %c0_19 = arith.constant 0 : index
    %24 = vector.load %arg8[%c0_18, %c0_19] : memref<1x128xf32, #tpu.memory_space<vmem>>, vector<1x128xf32>
    %25 = vector.broadcast %24 : vector<1x128xf32> to vector<8x128xf32>
    %26 = arith.mulf %23, %25 : vector<8x128xf32>
    %cst_20 = arith.constant dense<0.000000e+00> : vector<8xf32>
    %27 = vector.multi_reduction <add>, %26, %cst_20 [1] : vector<8x128xf32> to vector<8xf32>
    %28 = vector.shape_cast %27 : vector<8xf32> to vector<8x1xf32>
    %c0_21 = arith.constant 0 : index
    %c0_22 = arith.constant 0 : index
    %29 = vector.load %arg9[%c0_21, %c0_22] : memref<1x1xf32, #tpu.memory_space<vmem>>, vector<1x1xf32>
    %30 = vector.broadcast %29 : vector<1x1xf32> to vector<8x1xf32>
    %31 = arith.addf %28, %30 : vector<8x1xf32>
    %c0_23 = arith.constant 0 : index
    %c0_24 = arith.constant 0 : index
    %32 = vector.load %arg10[%c0_23, %c0_24] : memref<8x1xf32, #tpu.memory_space<vmem>>, vector<8x1xf32>
    tpu.vector_store %arg10[%c0_23, %c0_24], %31 {strides = array<i32>} : memref<8x1xf32, #tpu.memory_space<vmem>>, vector<8x1xf32>,
    return
  }
  func.func @transform_0(%arg0: i32) -> (i32, i32) {
    %c0_i32 = arith.constant 0 : i32
    %c0_i32_0 = arith.constant 0 : i32
    return %arg0, %c0_i32 : i32, i32
  }
  func.func @transform_1(%arg0: i32) -> (i32, i32) {
    %c0_i32 = arith.constant 0 : i32
    %c0_i32_0 = arith.constant 0 : i32
    %c0_i32_1 = arith.constant 0 : i32
    return %c0_i32, %c0_i32_0 : i32, i32
  }
  func.func @transform_2(%arg0: i32) -> (i32, i32) {
    %c0_i32 = arith.constant 0 : i32
    %c0_i32_0 = arith.constant 0 : i32
    %c0_i32_1 = arith.constant 0 : i32
    return %c0_i32, %c0_i32_0 : i32, i32
  }
  func.func @transform_3(%arg0: i32) -> (i32, i32) {
    %c0_i32 = arith.constant 0 : i32
    %c0_i32_0 = arith.constant 0 : i32
    %c0_i32_1 = arith.constant 0 : i32
    return %c0_i32, %c0_i32_0 : i32, i32
  }
  func.func @transform_4(%arg0: i32) -> (i32, i32) {
    %c0_i32 = arith.constant 0 : i32
    %c0_i32_0 = arith.constant 0 : i32
    %c0_i32_1 = arith.constant 0 : i32
    return %c0_i32, %c0_i32_0 : i32, i32
  }
  func.func @transform_5(%arg0: i32) -> (i32, i32) {
    %c0_i32 = arith.constant 0 : i32
    %c0_i32_0 = arith.constant 0 : i32
    %c0_i32_1 = arith.constant 0 : i32
    return %c0_i32, %c0_i32_0 : i32, i32
  }
  func.func @transform_6(%arg0: i32) -> (i32, i32) {
    %c0_i32 = arith.constant 0 : i32
    %c0_i32_0 = arith.constant 0 : i32
    %c0_i32_1 = arith.constant 0 : i32
    return %c0_i32, %c0_i32_0 : i32, i32
  }
  func.func @transform_7(%arg0: i32) -> (i32, i32) {
    %c0_i32 = arith.constant 0 : i32
    %c0_i32_0 = arith.constant 0 : i32
    %c0_i32_1 = arith.constant 0 : i32
    return %c0_i32, %c0_i32_0 : i32, i32
  }
  func.func @transform_8(%arg0: i32) -> (i32, i32) {
    %c0_i32 = arith.constant 0 : i32
    %c0_i32_0 = arith.constant 0 : i32
    %c0_i32_1 = arith.constant 0 : i32
    return %c0_i32, %c0_i32_0 : i32, i32
  }
  func.func @transform_9(%arg0: i32) -> (i32, i32) {
    %c0_i32 = arith.constant 0 : i32
    %c0_i32_0 = arith.constant 0 : i32
    return %arg0, %c0_i32 : i32, i32
  }
}

</mosaic_0001>

<llo_original>
// kernel: _lambda_.1
$region0: #{_lambda_.1}
  #allocation0 [shape = 'u32[]', space=smem, size = 0x4, offset = 0x4, fixed_abs, tag = 'smem constant byte address 0x4 - core index']
  #allocation1 [shape = 'u32[72,128]{1,0:T(1,128)}', space=vmem, size = 0x9000, scoped, tag = 'internal scratch']
  #allocation2 [shape = 'f32[1,1]{1,0:T(1,128)S(1)}', space=vmem, size = 0x200, scoped, tag = 'scoped memory for _lambda_.1']
  %s0 = inlined_call_operand.vmem [shape: bf16[8,32], index: 0, kind: input, shape index: {}]
  %s1 = inlined_call_operand.vmem [shape: bf16[32,256], index: 1, kind: input, shape index: {}]
  %s2 = inlined_call_operand.vmem [shape: f32[1,256], index: 2, kind: input, shape index: {}]
  %s3 = inlined_call_operand.hbm [shape: bf16[256,256], index: 3, kind: input, shape index: {}]
  %s4 = inlined_call_operand.vmem [shape: f32[1,256], index: 4, kind: input, shape index: {}]
  %s5 = inlined_call_operand.hbm [shape: bf16[256,128], index: 5, kind: input, shape index: {}]
  %s6 = inlined_call_operand.vmem [shape: f32[1,128], index: 6, kind: input, shape index: {}]
  %s7 = inlined_call_operand.vmem [shape: f32[1,128], index: 7, kind: input, shape index: {}]
  %s8 = inlined_call_operand.<no memory space> [shape: f32[1,1], index: 8, kind: input, shape index: {}]
  %s9 = inlined_call_operand.vmem [shape: f32[8,1], index: 9, kind: output, shape index: {}]
  %s10 = sld [smem:[#allocation0]]
  $region54: #{_lambda_.1} parent=0
    _
  %s12 = ssub.s32 1, %s10
  %s13 = scalar_select 0, %s12, %s10
  %v14 = vstv %s8
  %15 = vst [vmem:[#allocation2] sm:$0x1] %v14
  $region1: #{_lambda_.1} parent=0
    #allocation3 [shape = 'u8[131072]{0}', space=vmem, size = 0x20000, scoped, tag = 'input window, operand 3, single buffered']
    #allocation4 [shape = 's32[1]{0}', space=sflag, size = 0x4, scoped, tag = 'scoped memory for _lambda_.1']
    #allocation5 [shape = 'u8[65536]{0}', space=vmem, size = 0x10000, scoped, tag = 'input window, operand 5, single buffered']
    #allocation6 [shape = 's32[1]{0}', space=sflag, size = 0x4, scoped, tag = 'scoped memory for _lambda_.1']
    %16 = vsyncpa [#allocation4], 0
    %17 = vsyncpa [#allocation6], 0
    // Predicated region
    $region2: #{_lambda_.1} parent=1 // pred_check
      _
    $region3: #{_lambda_.1} parent=1 // pred_check_branch
      %19 = sbr.rel (0) target = $region5
    $region4: #{_lambda_.1} parent=1 // pred_region
      _
    $region5: #{_lambda_.1} parent=1 // pred_fallthru
      _
    // Predicated region
    $region6: #{_lambda_.1} parent=1 // pred_check
      _
    $region7: #{_lambda_.1} parent=1 // pred_check_branch
      %21 = sbr.rel (0) target = $region9
    $region8: #{_lambda_.1} parent=1 // pred_region
      _
    $region9: #{_lambda_.1} parent=1 // pred_fallthru
      _
    // Predicated region
    $region10: #{_lambda_.1} parent=1 // pred_check
      _
    $region11: #{_lambda_.1} parent=1 // pred_check_branch
      %23 = sbr.rel (0) target = $region13
    $region12: #{_lambda_.1} parent=1 // pred_region
      _
    $region13: #{_lambda_.1} parent=1 // pred_fallthru
      _
    // Predicated region
    $region14: #{_lambda_.1} parent=1 // pred_check
      _
    $region15: #{_lambda_.1} parent=1 // pred_check_branch
      %25 = sbr.rel (0) target = $region17
    $region16: #{_lambda_.1} parent=1 // pred_region
      %27 = vsyncadd [#allocation4], 0
      %s28 = sshll.u32 %s3, 4
      %s29 = int_to_ptr.hbm [resolvable:$true] %s28
      %s30 = sshll.u32 [#allocation3], 4
      %s31 = int_to_ptr.vmem [resolvable:$true] %s30
      %36 = dma.hbm_to_vmem [thread:$0]  %s29, 4096, %s31, [#allocation4], 128, 128, 8
    $region17: #{_lambda_.1} parent=1 // pred_fallthru
      _
    // Predicated region
    $region18: #{_lambda_.1} parent=1 // pred_check
      _
    $region19: #{_lambda_.1} parent=1 // pred_check_branch
      %38 = sbr.rel (0) target = $region21
    $region20: #{_lambda_.1} parent=1 // pred_region
      _
    $region21: #{_lambda_.1} parent=1 // pred_fallthru
      _
    // Predicated region
    $region22: #{_lambda_.1} parent=1 // pred_check
      _
    $region23: #{_lambda_.1} parent=1 // pred_check_branch
      %40 = sbr.rel (0) target = $region25
    $region24: #{_lambda_.1} parent=1 // pred_region
      %42 = vsyncadd [#allocation6], 0
      %s43 = sshll.u32 %s5, 4
      %s44 = int_to_ptr.hbm [resolvable:$true] %s43
      %s45 = sshll.u32 [#allocation5], 4
      %s46 = int_to_ptr.vmem [resolvable:$true] %s45
      %51 = dma.hbm_to_vmem [thread:$0]  %s44, 2048, %s46, [#allocation6], 64, 64, 4
    $region25: #{_lambda_.1} parent=1 // pred_fallthru
      _
    // Predicated region
    $region26: #{_lambda_.1} parent=1 // pred_check
      _
    $region27: #{_lambda_.1} parent=1 // pred_check_branch
      %53 = sbr.rel (0) target = $region29
    $region28: #{_lambda_.1} parent=1 // pred_region
      _
    $region29: #{_lambda_.1} parent=1 // pred_fallthru
      _
    // Predicated region
    $region30: #{_lambda_.1} parent=1 // pred_check
      _
    $region31: #{_lambda_.1} parent=1 // pred_check_branch
      %55 = sbr.rel (0) target = $region33
    $region32: #{_lambda_.1} parent=1 // pred_region
      _
    $region33: #{_lambda_.1} parent=1 // pred_fallthru
      _
    // Predicated region
    $region34: #{_lambda_.1} parent=1 // pred_check
      _
    $region35: #{_lambda_.1} parent=1 // pred_check_branch
      %57 = sbr.rel (0) target = $region37
    $region36: #{_lambda_.1} parent=1 // pred_region
      _
    $region37: #{_lambda_.1} parent=1 // pred_fallthru
      _
    // Predicated region
    $region38: #{_lambda_.1} parent=1 // pred_check
      _
    $region39: #{_lambda_.1} parent=1 // pred_check_branch
      %59 = sbr.rel (0) target = $region41
    $region40: #{_lambda_.1} parent=1 // pred_region
      %61 = dma.done [#allocation4], 4096
    $region41: #{_lambda_.1} parent=1 // pred_fallthru
      _
    // Predicated region
    $region42: #{_lambda_.1} parent=1 // pred_check
      _
    $region43: #{_lambda_.1} parent=1 // pred_check_branch
      %63 = sbr.rel (0) target = $region45
    $region44: #{_lambda_.1} parent=1 // pred_region
      %65 = dma.done [#allocation6], 2048
    $region45: #{_lambda_.1} parent=1 // pred_fallthru
      _
    %v67 = vld [vmem:[%s0] sm:$0xf]
    %v68 = vld [vmem:[%s1] sm:$0xff]
    %v69 = vld [vmem:[%s1 + $0x8] sm:$0xff]
    %v70 = vld [vmem:[%s1 + $0x10] sm:$0xff]
    %v71 = vld [vmem:[%s1 + $0x18] sm:$0xff]
    %v72 = vld [vmem:[%s2] sm:$0x3]
    %v74 = vperm.slane %v72, 0
    %v75 = vperm.slane %v72, 1
    %v82 = vunpack.c.l.b16 %v68
    %v83 = vunpack.c.h.b16 %v68
    %v84 = vunpack.c.l.b16 %v69
    %v85 = vunpack.c.h.b16 %v69
    %v86 = vunpack.c.l.b16 %v70
    %v87 = vunpack.c.h.b16 %v70
    %v88 = vunpack.c.l.b16 %v71
    %v89 = vunpack.c.h.b16 %v71
    %v90 = vpack.c.b16 %v84, %v82
    %v91 = vpack.c.b16 %v85, %v83
    %v92 = vpack.c.b16 %v88, %v86
    %v93 = vpack.c.b16 %v89, %v87
    %vm98 = vcmask 261120
    %v100 = vsel %vm98, %v67, 0
    %102 = vmatpush.bf16.msra.mxu0 0
    %103 = vmatpush.bf16.msra.mxu0 0
    %104 = vmatpush.bf16.msra.mxu0 0
    %105 = vmatpush.bf16.msra.mxu0 0
    %106 = vmatpush.bf16.msra.mxu0 0
    %107 = vmatpush.bf16.msra.mxu0 0
    %108 = vmatpush.bf16.msra.mxu0 %v92
    %109 = vmatpush.bf16.msra.mxu0 %v90
    %110 = vmatmul.bf16.gmra.mxu0 %v100
    %v111 = vpop.f32.mrf.mxu0
    %v112 = vadd.f32 %v74, %v111
    %v113 = vpop.f32.mrf.mxu0
    %114 = vdwg.mxu0
    %115 = vmatpush.bf16.msra.mxu0 0
    %116 = vmatpush.bf16.msra.mxu0 0
    %117 = vmatpush.bf16.msra.mxu0 0
    %118 = vmatpush.bf16.msra.mxu0 0
    %119 = vmatpush.bf16.msra.mxu0 0
    %120 = vmatpush.bf16.msra.mxu0 0
    %121 = vmatpush.bf16.msra.mxu0 %v93
    %122 = vmatpush.bf16.msra.mxu0 %v91
    %123 = vmatmul.bf16.gmra.mxu0 %v100
    %v124 = vpop.f32.mrf.mxu0
    %v125 = vadd.f32 %v75, %v124
    %v126 = vpop.f32.mrf.mxu0
    %127 = vdwg.mxu0
    %v128 = vmax.f32 %v112, 0.0
    %v129 = vmax.f32 %v125, 0.0
    %v130 = vpack.c.bf16 %v128, %v128
    %v131 = vpack.c.bf16 %v129, %v129
    %v132 = vld [vmem:[#allocation3] sm:$0xff]
    %v133 = vld [vmem:[#allocation3 + $0x8] sm:$0xff]
    %v134 = vld [vmem:[#allocation3 + $0x10] sm:$0xff]
    %v135 = vld [vmem:[#allocation3 + $0x18] sm:$0xff]
    %v136 = vld [vmem:[#allocation3 + $0x20] sm:$0xff]
    %v137 = vld [vmem:[#allocation3 + $0x28] sm:$0xff]
    %v138 = vld [vmem:[#allocation3 + $0x30] sm:$0xff]
    %v139 = vld [vmem:[#allocation3 + $0x38] sm:$0xff]
    %v140 = vld [vmem:[#allocation3 + $0x40] sm:$0xff]
    %v141 = vld [vmem:[#allocation3 + $0x48] sm:$0xff]
    %v142 = vld [vmem:[#allocation3 + $0x50] sm:$0xff]
    %v143 = vld [vmem:[#allocation3 + $0x58] sm:$0xff]
    %v144 = vld [vmem:[#allocation3 + $0x60] sm:$0xff]
    %v145 = vld [vmem:[#allocation3 + $0x68] sm:$0xff]
    %v146 = vld [vmem:[#allocation3 + $0x70] sm:$0xff]
    %v147 = vld [vmem:[#allocation3 + $0x78] sm:$0xff]
    %v148 = vld [vmem:[#allocation3 + $0x80] sm:$0xff]
    %v149 = vld [vmem:[#allocation3 + $0x88] sm:$0xff]
    %v150 = vld [vmem:[#allocation3 + $0x90] sm:$0xff]
    %v151 = vld [vmem:[#allocation3 + $0x98] sm:$0xff]
    %v152 = vld [vmem:[#allocation3 + $0xa0] sm:$0xff]
    %v153 = vld [vmem:[#allocation3 + $0xa8] sm:$0xff]
    %v154 = vld [vmem:[#allocation3 + $0xb0] sm:$0xff]
    %v155 = vld [vmem:[#allocation3 + $0xb8] sm:$0xff]
    %v156 = vld [vmem:[#allocation3 + $0xc0] sm:$0xff]
    %v157 = vld [vmem:[#allocation3 + $0xc8] sm:$0xff]
    %v158 = vld [vmem:[#allocation3 + $0xd0] sm:$0xff]
    %v159 = vld [vmem:[#allocation3 + $0xd8] sm:$0xff]
    %v160 = vld [vmem:[#allocation3 + $0xe0] sm:$0xff]
    %v161 = vld [vmem:[#allocation3 + $0xe8] sm:$0xff]
    %v162 = vld [vmem:[#allocation3 + $0xf0] sm:$0xff]
    %v163 = vld [vmem:[#allocation3 + $0xf8] sm:$0xff]
    %v164 = vld [vmem:[%s4] sm:$0x3]
    %v166 = vperm.slane %v164, 0
    %v167 = vperm.slane %v164, 1
    %v202 = vunpack.c.l.b16 %v132
    %v203 = vunpack.c.h.b16 %v132
    %v204 = vunpack.c.l.b16 %v133
    %v205 = vunpack.c.h.b16 %v133
    %v206 = vunpack.c.l.b16 %v134
    %v207 = vunpack.c.h.b16 %v134
    %v208 = vunpack.c.l.b16 %v135
    %v209 = vunpack.c.h.b16 %v135
    %v210 = vunpack.c.l.b16 %v136
    %v211 = vunpack.c.h.b16 %v136
    %v212 = vunpack.c.l.b16 %v137
    %v213 = vunpack.c.h.b16 %v137
    %v214 = vunpack.c.l.b16 %v138
    %v215 = vunpack.c.h.b16 %v138
    %v216 = vunpack.c.l.b16 %v139
    %v217 = vunpack.c.h.b16 %v139
    %v218 = vunpack.c.l.b16 %v140
    %v219 = vunpack.c.h.b16 %v140
    %v220 = vunpack.c.l.b16 %v141
    %v221 = vunpack.c.h.b16 %v141
    %v222 = vunpack.c.l.b16 %v142
    %v223 = vunpack.c.h.b16 %v142
    %v224 = vunpack.c.l.b16 %v143
    %v225 = vunpack.c.h.b16 %v143
    %v226 = vunpack.c.l.b16 %v144
    %v227 = vunpack.c.h.b16 %v144
    %v228 = vunpack.c.l.b16 %v145
    %v229 = vunpack.c.h.b16 %v145
    %v230 = vunpack.c.l.b16 %v146
    %v231 = vunpack.c.h.b16 %v146
    %v232 = vunpack.c.l.b16 %v147
    %v233 = vunpack.c.h.b16 %v147
    %v234 = vunpack.c.l.b16 %v148
    %v235 = vunpack.c.h.b16 %v148
    %v236 = vunpack.c.l.b16 %v149
    %v237 = vunpack.c.h.b16 %v149
    %v238 = vunpack.c.l.b16 %v150
    %v239 = vunpack.c.h.b16 %v150
    %v240 = vunpack.c.l.b16 %v151
    %v241 = vunpack.c.h.b16 %v151
    %v242 = vunpack.c.l.b16 %v152
    %v243 = vunpack.c.h.b16 %v152
    %v244 = vunpack.c.l.b16 %v153
    %v245 = vunpack.c.h.b16 %v153
    %v246 = vunpack.c.l.b16 %v154
    %v247 = vunpack.c.h.b16 %v154
    %v248 = vunpack.c.l.b16 %v155
    %v249 = vunpack.c.h.b16 %v155
    %v250 = vunpack.c.l.b16 %v156
    %v251 = vunpack.c.h.b16 %v156
    %v252 = vunpack.c.l.b16 %v157
    %v253 = vunpack.c.h.b16 %v157
    %v254 = vunpack.c.l.b16 %v158
    %v255 = vunpack.c.h.b16 %v158
    %v256 = vunpack.c.l.b16 %v159
    %v257 = vunpack.c.h.b16 %v159
    %v258 = vunpack.c.l.b16 %v160
    %v259 = vunpack.c.h.b16 %v160
    %v260 = vunpack.c.l.b16 %v161
    %v261 = vunpack.c.h.b16 %v161
    %v262 = vunpack.c.l.b16 %v162
    %v263 = vunpack.c.h.b16 %v162
    %v264 = vunpack.c.l.b16 %v163
    %v265 = vunpack.c.h.b16 %v163
    %v266 = vpack.c.b16 %v204, %v202
    %v267 = vpack.c.b16 %v205, %v203
    %v268 = vpack.c.b16 %v208, %v206
    %v269 = vpack.c.b16 %v209, %v207
    %v270 = vpack.c.b16 %v212, %v210
    %v271 = vpack.c.b16 %v213, %v211
    %v272 = vpack.c.b16 %v216, %v214
    %v273 = vpack.c.b16 %v217, %v215
    %v274 = vpack.c.b16 %v220, %v218
    %v275 = vpack.c.b16 %v221, %v219
    %v276 = vpack.c.b16 %v224, %v222
    %v277 = vpack.c.b16 %v225, %v223
    %v278 = vpack.c.b16 %v228, %v226
    %v279 = vpack.c.b16 %v229, %v227
    %v280 = vpack.c.b16 %v232, %v230
    %v281 = vpack.c.b16 %v233, %v231
    %v282 = vpack.c.b16 %v236, %v234
    %v283 = vpack.c.b16 %v237, %v235
    %v284 = vpack.c.b16 %v240, %v238
    %v285 = vpack.c.b16 %v241, %v239
    %v286 = vpack.c.b16 %v244, %v242
    %v287 = vpack.c.b16 %v245, %v243
    %v288 = vpack.c.b16 %v248, %v246
    %v289 = vpack.c.b16 %v249, %v247
    %v290 = vpack.c.b16 %v252, %v250
    %v291 = vpack.c.b16 %v253, %v251
    %v292 = vpack.c.b16 %v256, %v254
    %v293 = vpack.c.b16 %v257, %v255
    %v294 = vpack.c.b16 %v260, %v258
    %v295 = vpack.c.b16 %v261, %v259
    %v296 = vpack.c.b16 %v264, %v262
    %v297 = vpack.c.b16 %v265, %v263
    %330 = vmatpush.bf16.msra.mxu0 %v280
    %331 = vmatpush.bf16.msra.mxu0 %v278
    %332 = vmatpush.bf16.msra.mxu0 %v276
    %333 = vmatpush.bf16.msra.mxu0 %v274
    %334 = vmatpush.bf16.msra.mxu0 %v272
    %335 = vmatpush.bf16.msra.mxu0 %v270
    %336 = vmatpush.bf16.msra.mxu0 %v268
    %337 = vmatpush.bf16.msra.mxu0 %v266
    %338 = vmatmul.bf16.gmra.mxu0 %v130
    %v339 = vpop.f32.mrf.mxu0
    %v340 = vadd.f32 %v166, %v339
    %v341 = vpop.f32.mrf.mxu0
    %342 = vdwg.mxu0
    %343 = vmatpush.bf16.msra.mxu0 %v296
    %344 = vmatpush.bf16.msra.mxu0 %v294
    %345 = vmatpush.bf16.msra.mxu0 %v292
    %346 = vmatpush.bf16.msra.mxu0 %v290
    %347 = vmatpush.bf16.msra.mxu0 %v288
    %348 = vmatpush.bf16.msra.mxu0 %v286
    %349 = vmatpush.bf16.msra.mxu0 %v284
    %350 = vmatpush.bf16.msra.mxu0 %v282
    %351 = vmatmul.bf16.gmra.mxu0 %v131
    %v352 = vpop.f32.mrf.mxu0
    %v353 = vadd.f32 %v340, %v352
    %v354 = vpop.f32.mrf.mxu0
    %355 = vdwg.mxu0
    %356 = vmatpush.bf16.msra.mxu0 %v281
    %357 = vmatpush.bf16.msra.mxu0 %v279
    %358 = vmatpush.bf16.msra.mxu0 %v277
    %359 = vmatpush.bf16.msra.mxu0 %v275
    %360 = vmatpush.bf16.msra.mxu0 %v273
    %361 = vmatpush.bf16.msra.mxu0 %v271
    %362 = vmatpush.bf16.msra.mxu0 %v269
    %363 = vmatpush.bf16.msra.mxu0 %v267
    %364 = vmatmul.bf16.gmra.mxu0 %v130
    %v365 = vpop.f32.mrf.mxu0
    %v366 = vadd.f32 %v167, %v365
    %v367 = vpop.f32.mrf.mxu0
    %368 = vdwg.mxu0
    %369 = vmatpush.bf16.msra.mxu0 %v297
    %370 = vmatpush.bf16.msra.mxu0 %v295
    %371 = vmatpush.bf16.msra.mxu0 %v293
    %372 = vmatpush.bf16.msra.mxu0 %v291
    %373 = vmatpush.bf16.msra.mxu0 %v289
    %374 = vmatpush.bf16.msra.mxu0 %v287
    %375 = vmatpush.bf16.msra.mxu0 %v285
    %376 = vmatpush.bf16.msra.mxu0 %v283
    %377 = vmatmul.bf16.gmra.mxu0 %v131
    %v378 = vpop.f32.mrf.mxu0
    %v379 = vadd.f32 %v366, %v378
    %v380 = vpop.f32.mrf.mxu0
    %381 = vdwg.mxu0
    %v382 = vmax.f32 %v353, 0.0
    %v383 = vmax.f32 %v379, 0.0
    %v384 = vpack.c.bf16 %v382, %v382
    %v385 = vpack.c.bf16 %v383, %v383
    %v386 = vld [vmem:[#allocation5] sm:$0xf]
    %v387 = vld [vmem:[#allocation5 + $0x4] sm:$0xf]
    %v388 = vld [vmem:[#allocation5 + $0x8] sm:$0xf]
    %v389 = vld [vmem:[#allocation5 + $0xc] sm:$0xf]
    %v390 = vld [vmem:[#allocation5 + $0x10] sm:$0xf]
    %v391 = vld [vmem:[#allocation5 + $0x14] sm:$0xf]
    %v392 = vld [vmem:[#allocation5 + $0x18] sm:$0xf]
    %v393 = vld [vmem:[#allocation5 + $0x1c] sm:$0xf]
    %v394 = vld [vmem:[#allocation5 + $0x20] sm:$0xf]
    %v395 = vld [vmem:[#allocation5 + $0x24] sm:$0xf]
    %v396 = vld [vmem:[#allocation5 + $0x28] sm:$0xf]
    %v397 = vld [vmem:[#allocation5 + $0x2c] sm:$0xf]
    %v398 = vld [vmem:[#allocation5 + $0x30] sm:$0xf]
    %v399 = vld [vmem:[#allocation5 + $0x34] sm:$0xf]
    %v400 = vld [vmem:[#allocation5 + $0x38] sm:$0xf]
    %v401 = vld [vmem:[#allocation5 + $0x3c] sm:$0xf]
    %v402 = vld [vmem:[#allocation5 + $0x40] sm:$0xf]
    %v403 = vld [vmem:[#allocation5 + $0x44] sm:$0xf]
    %v404 = vld [vmem:[#allocation5 + $0x48] sm:$0xf]
    %v405 = vld [vmem:[#allocation5 + $0x4c] sm:$0xf]
    %v406 = vld [vmem:[#allocation5 + $0x50] sm:$0xf]
    %v407 = vld [vmem:[#allocation5 + $0x54] sm:$0xf]
    %v408 = vld [vmem:[#allocation5 + $0x58] sm:$0xf]
    %v409 = vld [vmem:[#allocation5 + $0x5c] sm:$0xf]
    %v410 = vld [vmem:[#allocation5 + $0x60] sm:$0xf]
    %v411 = vld [vmem:[#allocation5 + $0x64] sm:$0xf]
    %v412 = vld [vmem:[#allocation5 + $0x68] sm:$0xf]
    %v413 = vld [vmem:[#allocation5 + $0x6c] sm:$0xf]
    %v414 = vld [vmem:[#allocation5 + $0x70] sm:$0xf]
    %v415 = vld [vmem:[#allocation5 + $0x74] sm:$0xf]
    %v416 = vld [vmem:[#allocation5 + $0x78] sm:$0xf]
    %v417 = vld [vmem:[#allocation5 + $0x7c] sm:$0xf]
    %v418 = vld [vmem:[%s6] sm:$0x1]
    %v420 = vperm.slane %v418, 0
    %v454 = vunpack.c.l.b16 %v386
    %v455 = vunpack.c.l.b16 %v387
    %v456 = vunpack.c.l.b16 %v388
    %v457 = vunpack.c.l.b16 %v389
    %v458 = vunpack.c.l.b16 %v390
    %v459 = vunpack.c.l.b16 %v391
    %v460 = vunpack.c.l.b16 %v392
    %v461 = vunpack.c.l.b16 %v393
    %v462 = vunpack.c.l.b16 %v394
    %v463 = vunpack.c.l.b16 %v395
    %v464 = vunpack.c.l.b16 %v396
    %v465 = vunpack.c.l.b16 %v397
    %v466 = vunpack.c.l.b16 %v398
    %v467 = vunpack.c.l.b16 %v399
    %v468 = vunpack.c.l.b16 %v400
    %v469 = vunpack.c.l.b16 %v401
    %v470 = vunpack.c.l.b16 %v402
    %v471 = vunpack.c.l.b16 %v403
    %v472 = vunpack.c.l.b16 %v404
    %v473 = vunpack.c.l.b16 %v405
    %v474 = vunpack.c.l.b16 %v406
    %v475 = vunpack.c.l.b16 %v407
    %v476 = vunpack.c.l.b16 %v408
    %v477 = vunpack.c.l.b16 %v409
    %v478 = vunpack.c.l.b16 %v410
    %v479 = vunpack.c.l.b16 %v411
    %v480 = vunpack.c.l.b16 %v412
    %v481 = vunpack.c.l.b16 %v413
    %v482 = vunpack.c.l.b16 %v414
    %v483 = vunpack.c.l.b16 %v415
    %v484 = vunpack.c.l.b16 %v416
    %v485 = vunpack.c.l.b16 %v417
    %v486 = vpack.c.b16 %v455, %v454
    %v487 = vpack.c.b16 %v457, %v456
    %v488 = vpack.c.b16 %v459, %v458
    %v489 = vpack.c.b16 %v461, %v460
    %v490 = vpack.c.b16 %v463, %v462
    %v491 = vpack.c.b16 %v465, %v464
    %v492 = vpack.c.b16 %v467, %v466
    %v493 = vpack.c.b16 %v469, %v468
    %v494 = vpack.c.b16 %v471, %v470
    %v495 = vpack.c.b16 %v473, %v472
    %v496 = vpack.c.b16 %v475, %v474
    %v497 = vpack.c.b16 %v477, %v476
    %v498 = vpack.c.b16 %v479, %v478
    %v499 = vpack.c.b16 %v481, %v480
    %v500 = vpack.c.b16 %v483, %v482
    %v501 = vpack.c.b16 %v485, %v484
    %518 = vmatpush.bf16.msra.mxu0 %v493
    %519 = vmatpush.bf16.msra.mxu0 %v492
    %520 = vmatpush.bf16.msra.mxu0 %v491
    %521 = vmatpush.bf16.msra.mxu0 %v490
    %522 = vmatpush.bf16.msra.mxu0 %v489
    %523 = vmatpush.bf16.msra.mxu0 %v488
    %524 = vmatpush.bf16.msra.mxu0 %v487
    %525 = vmatpush.bf16.msra.mxu0 %v486
    %526 = vmatmul.bf16.gmra.mxu0 %v384
    %v527 = vpop.f32.mrf.mxu0
    %v528 = vadd.f32 %v420, %v527
    %v529 = vpop.f32.mrf.mxu0
    %530 = vdwg.mxu0
    %531 = vmatpush.bf16.msra.mxu0 %v501
    %532 = vmatpush.bf16.msra.mxu0 %v500
    %533 = vmatpush.bf16.msra.mxu0 %v499
    %534 = vmatpush.bf16.msra.mxu0 %v498
    %535 = vmatpush.bf16.msra.mxu0 %v497
    %536 = vmatpush.bf16.msra.mxu0 %v496
    %537 = vmatpush.bf16.msra.mxu0 %v495
    %538 = vmatpush.bf16.msra.mxu0 %v494
    %539 = vmatmul.bf16.gmra.mxu0 %v385
    %v540 = vpop.f32.mrf.mxu0
    %v541 = vadd.f32 %v528, %v540
    %v542 = vpop.f32.mrf.mxu0
    %543 = vdwg.mxu0
    %v544 = vmax.f32 %v541, 0.0
    %v545 = vld [vmem:[%s7] sm:$0x1]
    %v547 = vperm.slane %v545, 0
    %v549 = vmul.f32 %v544, %v547
    %550 = vadd.xlane.f32.xlu0 %v549
    %v551 = vpop.xlane.xlu0 %550
    %v552 = vld [vmem:[#allocation2] sm:$0x1]
    %v554 = vperm.slane %v552, 0
    %v556 = vadd.f32 %v551, %v554
    %vm557 = vcmask 7168
    %558 = vst.msk [vmem:[%s9] sm:$0xff] %vm557, %v556
    // Predicated region
    $region46: #{_lambda_.1} parent=1 // pred_check
      _
    $region47: #{_lambda_.1} parent=1 // pred_check_branch
      %560 = sbr.rel (0) target = $region49
    $region48: #{_lambda_.1} parent=1 // pred_region
      _
    $region49: #{_lambda_.1} parent=1 // pred_fallthru
      _
    // Predicated region
    $region50: #{_lambda_.1} parent=1 // pred_check
      _
    $region51: #{_lambda_.1} parent=1 // pred_check_branch
      %562 = sbr.rel (0) target = $region53
    $region52: #{_lambda_.1} parent=1 // pred_region
      _
    $region53: #{_lambda_.1} parent=1 // pred_fallthru
      _
    %563 = vsyncpa [#allocation4], 1
    %564 = vsyncpa [#allocation6], 1

</llo_original>
